<compile_context>
chip_gen: v7x
topology: tpu7x:2x2x1
jax: 0.10.0
libtpu: 0.0.40
codegen_flags: <defaults>
</compile_context>

<pallas_src>
import jax
import jax.numpy as jnp
from jax.experimental import pallas as pl
from jax.experimental.pallas import tpu as pltpu

_NEG_BIG = -1e30  # finite stand-in for -inf; keeps online softmax NaN-free on padded tiles


def _attn1d_pool_kernel(x_ref, mask_ref, w_ref, out_ref, m_acc, l_acc, s_acc):
    """One (batch-tile, seq-tile) grid step.

    x_ref   : (TB, TS, H)  feature tile (input dtype)
    mask_ref: (TB, TS)     mask tile in x.dtype (0 = padded position)
    w_ref   : (1, H)       1x1-conv weight, x.dtype, VMEM-resident across seq steps
    out_ref : (TB, H)      pooled output block (written on last seq step only)
    m_acc   : (TB, 1) f32  running max of attention logits
    l_acc   : (TB, 1) f32  running softmax denominator
    s_acc   : (TB, H) f32  running softmax-weighted feature sum
    """
    k = pl.program_id(1)

    @pl.when(k == 0)
    def _():
        m_acc[...] = jnp.full_like(m_acc, _NEG_BIG)
        l_acc[...] = jnp.zeros_like(l_acc)
        s_acc[...] = jnp.zeros_like(s_acc)

    x = x_ref[...]                                   # (TB, TS, H)
    tb, ts, h = x.shape

    # Attention logits on the MXU: Conv1d(hidden, 1, 1) == per-position dot(x, w).
    # (Bias dropped: softmax is shift-invariant, so it cancels exactly.)
    wb = jnp.broadcast_to(w_ref[...][None], (tb, 1, h))              # (TB, 1, H)
    scores = jnp.einsum('bqh,bsh->bqs', wb, x,
                        preferred_element_type=jnp.float32).reshape(tb, ts)

    # masked_fill_(~mask, -inf): large finite negative keeps padded tiles NaN-free.
    scores = jnp.where(mask_ref[...] != 0, scores, _NEG_BIG)         # (TB, TS) f32

    # Online softmax over the sequence (reduction) grid axis.
    m_prev = m_acc[...]                                              # (TB, 1)
    m_new = jnp.maximum(m_prev, jnp.max(scores, axis=-1, keepdims=True))
    alpha = jnp.exp(m_prev - m_new)                                  # (TB, 1)
    p = jnp.exp(scores - m_new)                                      # (TB, TS) f32

    l_acc[...] = alpha * l_acc[...] + jnp.sum(p, axis=-1, keepdims=True)
    # Weighted feature sum on the MXU (batched matmul, q == 1), f32 accumulation.
    contrib = jnp.einsum('bqs,bsh->bqh', p[:, None, :].astype(x.dtype), x,
                         preferred_element_type=jnp.float32)         # (TB, 1, H)
    s_acc[...] = alpha * s_acc[...] + contrib.reshape(tb, h)
    m_acc[...] = m_new

    @pl.when(k == pl.num_programs(1) - 1)
    def _():
        inv_l = pl.reciprocal(l_acc[...], approx=True)               # EUP slot
        out_ref[...] = (s_acc[...] * inv_l).astype(out_ref.dtype)


def _vmem_capacity_bytes():
    try:
        return int(pltpu.get_tpu_info().vmem_capacity_bytes)
    except Exception:
        return 64 * 2**20   # conservative default (v7x per-TensorCore)


def _batch_tile(B, granule):
    """Largest batch tile that is a multiple of the sublane granule (or full B).

    Keeping the tile at one granule (8 for f32, 16 for bf16) means the "parallel"
    batch grid axis has >= 2 blocks whenever B >= 2*granule, so both v7x
    TensorCores get work.
    """
    if B <= granule:
        return B                     # full extent is always a legal block dim
    if B % granule == 0:
        return granule
    return B                         # awkward batch: single full-extent tile


def _choose_seq_tile(S, max_rows):
    """Pick (TS, S_padded) so TS divides S_padded and the tile fits the VMEM budget."""
    if S <= max_rows:
        return S, S                  # single full-extent tile (always legal)
    t = max(128, (max_rows // 128) * 128)
    tt = t
    while tt >= 128:
        if S % tt == 0:
            return tt, S
        tt -= 128
    # No 128-aligned divisor of S: pad the sequence (with mask=0) rather than use a
    # single full-sequence tile that may not fit VMEM.
    s_pad = -(-S // t) * t
    return t, s_pad


def attention_1d_pooling(x, input_mask, conv_weight, conv_bias=None):
    """Pallas implementation of Attention1dPooling.forward.

    x          : (B, S, H) features
    input_mask : (B, S) / (B, S, 1) float or bool mask, or None
    conv_weight: (1, H, 1)  torch Conv1d(hidden_size, 1, kernel_size=1) weight layout
    conv_bias  : (1,) — unused: softmax is shift-invariant, so the bias cancels exactly.
    Returns (B, H) pooled features in x.dtype.
    """
    del conv_bias
    B, S, H = x.shape
    dt = x.dtype
    isz = jnp.dtype(dt).itemsize

    if input_mask is None:
        mask2d = jnp.ones((B, S), dtype=dt)
    else:
        mask2d = input_mask.reshape(B, S).astype(dt)

    # 1x1-conv weight as a lane-dense (1, H) row, pre-cast to the feature dtype.
    w = conv_weight.reshape(1, H).astype(dt)

    vmem_cap = _vmem_capacity_bytes()

    granule = max(8, 32 // isz)          # sublane granule: 8 (f32), 16 (bf16), 32 (int8)
    TB = _batch_tile(B, granule)

    # Sequence tile from a VMEM byte budget: double-buffered feature + mask tiles
    # should use ~35% of physical VMEM (leaves room for output, scratch, compiler).
    budget = int(0.35 * vmem_cap)
    bytes_per_seq_row = 2 * TB * (H + 1) * isz
    max_rows = max(128, budget // max(bytes_per_seq_row, 1))
    TS, S_pad = _choose_seq_tile(S, max_rows)

    if S_pad > S:
        x = jnp.pad(x, ((0, 0), (0, S_pad - S), (0, 0)))
        mask2d = jnp.pad(mask2d, ((0, 0), (0, S_pad - S)))   # padded positions masked out

    nb, nk = B // TB, S_pad // TS

    est = (2 * TB * TS * (H + 1) * isz   # double-buffered feature + mask tiles
           + H * isz                     # resident weight row
           + 2 * TB * H * isz            # double-buffered output block
           + TB * (H + 2) * 4)           # f32 scratch accumulators
    vmem_limit = int(min(max(2 * est, 16 * 2**20), int(0.85 * vmem_cap)))

    out = pl.pallas_call(
        _attn1d_pool_kernel,
        out_shape=jax.ShapeDtypeStruct((B, H), dt),
        grid_spec=pltpu.PrefetchScalarGridSpec(
            num_scalar_prefetch=0,
            grid=(nb, nk),                                        # (batch tiles, seq tiles)
            in_specs=[
                pl.BlockSpec((TB, TS, H), lambda i, k: (i, k, 0)),  # features: pipelined
                pl.BlockSpec((TB, TS), lambda i, k: (i, k)),        # mask: pipelined
                pl.BlockSpec((1, H), lambda i, k: (0, 0)),          # weight: VMEM-resident
            ],
            out_specs=pl.BlockSpec((TB, H), lambda i, k: (i, 0)),
            scratch_shapes=[
                pltpu.VMEM((TB, 1), jnp.float32),    # running max
                pltpu.VMEM((TB, 1), jnp.float32),    # running denom
                pltpu.VMEM((TB, H), jnp.float32),    # running weighted sum
            ],
        ),
        compiler_params=pltpu.CompilerParams(
            dimension_semantics=("parallel", "arbitrary"),
            vmem_limit_bytes=vmem_limit,
        ),
    )(x, mask2d, w)
    return out


def _reference(x, input_mask, conv_weight, conv_bias):
    """Pure-JAX reference of the PyTorch Attention1dPooling forward."""
    B, S, H = x.shape
    w = conv_weight.reshape(H).astype(jnp.float32)
    attn = jnp.einsum('bsh,h->bs', x.astype(jnp.float32), w) + conv_bias[0]
    if input_mask is not None:
        attn = jnp.where(input_mask.reshape(B, S) != 0, attn, -jnp.inf)
    attn = jax.nn.softmax(attn, axis=-1)
    return jnp.sum(attn[:, :, None] * x.astype(jnp.float32), axis=1).astype(x.dtype)


if __name__ == "__main__":
    # Config-implied small shapes: batch=2, seq=8, hidden_size=32.
    B, S, H = 2, 8, 32

    key = jax.random.PRNGKey(0)
    k_x, k_w, k_b = jax.random.split(key, 3)

    x = jax.random.normal(k_x, (B, S, H), dtype=jnp.float32)
    lengths = jnp.array([S, S - 3], dtype=jnp.int32)
    input_mask = (jnp.arange(S)[None, :] < lengths[:, None]).astype(jnp.float32)

    # Synthetic Conv1d(hidden, 1, kernel_size=1) parameters (torch layout).
    conv_weight = jax.random.normal(k_w, (1, H, 1), dtype=jnp.float32) * 0.1
    conv_bias = jax.random.normal(k_b, (1,), dtype=jnp.float32) * 0.01

    out = jax.block_until_ready(
        attention_1d_pooling(x, input_mask, conv_weight, conv_bias))
    ref = _reference(x, input_mask, conv_weight, conv_bias)
    assert out.shape == (B, H)
    # Tolerance allows for the approx (EUP) reciprocal in the epilogue.
    assert jnp.allclose(out, ref, atol=2e-3, rtol=2e-3), (out, ref)

    # Also exercise the mask=None path (plain softmax over the full sequence).
    out_nm = jax.block_until_ready(
        attention_1d_pooling(x, None, conv_weight, conv_bias))
    ref_nm = _reference(x, None, conv_weight, conv_bias)
    assert jnp.allclose(out_nm, ref_nm, atol=2e-3, rtol=2e-3), (out_nm, ref_nm)

    # TODO(synk): a row whose mask is all-zero yields a uniform average of x here,
    # whereas PyTorch's softmax(-inf everywhere) yields NaN (intentional divergence).
    print("KERNEL_OK")
</pallas_src>

<mosaic_0001>
module attributes {stable_mosaic.version = 11 : i64} {
  func.func @_attn1d_pool_kernel(%arg0: i32, %arg1: i32, %arg2: memref<2x8x32xf32, #tpu.memory_space<vmem>>, %arg3: memref<2x8xf32, #tpu.memory_space<vmem>>, %arg4: memref<1x32xf32, #tpu.memory_space<vmem>>, %arg5: memref<2x32xf32, #tpu.memory_space<vmem>>, %arg6: memref<2x1xf32, #tpu.memory_space<vmem>>, %arg7: memref<2x1xf32, #tpu.memory_space<vmem>>, %arg8: memref<2x32xf32, #tpu.memory_space<vmem>>) attributes {dimension_semantics = [#tpu.dimension_semantics<parallel>, #tpu.dimension_semantics<arbitrary>], iteration_bounds = array<i64: 1, 1>, scalar_prefetch = 0 : i64, scratch_operands = 3 : i64, tpu.core_type = #tpu.core_type<tc>, window_params = [{transform_indices = @transform_0, window_bounds = array<i64: 2, 8, 32>}, {transform_indices = @transform_1, window_bounds = array<i64: 2, 8>}, {pipeline_mode = #tpu.pipeline_mode<synchronous>, transform_indices = @transform_2, window_bounds = array<i64: 1, 32>}, {transform_indices = @transform_3, window_bounds = array<i64: 2, 32>}]} {
    %c0_i32 = arith.constant 0 : i32
    %0 = arith.cmpi eq, %arg1, %c0_i32 : i32
    %1 = arith.extui %0 : i1 to i32
    %c0_i32_0 = arith.constant 0 : i32
    %2 = arith.cmpi ne, %1, %c0_i32_0 : i32
    scf.if %2 {
      %cst_26 = arith.constant -1.000000e+30 : f32
      %42 = vector.broadcast %cst_26 : f32 to vector<2x1xf32>
      %c0_27 = arith.constant 0 : index
      %c0_28 = arith.constant 0 : index
      %43 = vector.load %arg6[%c0_27, %c0_28] : memref<2x1xf32, #tpu.memory_space<vmem>>, vector<2x1xf32>
      tpu.vector_store %arg6[%c0_27, %c0_28], %42 {strides = array<i32>} : memref<2x1xf32, #tpu.memory_space<vmem>>, vector<2x1xf32>,
      %cst_29 = arith.constant 0.000000e+00 : f32
      %44 = vector.broadcast %cst_29 : f32 to vector<2x1xf32>
      %c0_30 = arith.constant 0 : index
      %c0_31 = arith.constant 0 : index
      %45 = vector.load %arg7[%c0_30, %c0_31] : memref<2x1xf32, #tpu.memory_space<vmem>>, vector<2x1xf32>
      tpu.vector_store %arg7[%c0_30, %c0_31], %44 {strides = array<i32>} : memref<2x1xf32, #tpu.memory_space<vmem>>, vector<2x1xf32>,
      %cst_32 = arith.constant 0.000000e+00 : f32
      %46 = vector.broadcast %cst_32 : f32 to vector<2x32xf32>
      %c0_33 = arith.constant 0 : index
      %c0_34 = arith.constant 0 : index
      %47 = vector.load %arg8[%c0_33, %c0_34] : memref<2x32xf32, #tpu.memory_space<vmem>>, vector<2x32xf32>
      tpu.vector_store %arg8[%c0_33, %c0_34], %46 {strides = array<i32>} : memref<2x32xf32, #tpu.memory_space<vmem>>, vector<2x32xf32>,
    } else {
    }
    %c0 = arith.constant 0 : index
    %c0_1 = arith.constant 0 : index
    %c0_2 = arith.constant 0 : index
    %3 = vector.load %arg2[%c0, %c0_1, %c0_2] : memref<2x8x32xf32, #tpu.memory_space<vmem>>, vector<2x8x32xf32>
    %c0_3 = arith.constant 0 : index
    %c0_4 = arith.constant 0 : index
    %4 = vector.load %arg4[%c0_3, %c0_4] : memref<1x32xf32, #tpu.memory_space<vmem>>, vector<1x32xf32>
    %5 = vector.shape_cast %4 : vector<1x32xf32> to vector<1x1x32xf32>
    %6 = vector.shape_cast %5 : vector<1x1x32xf32> to vector<1x1x32xf32>
    %7 = vector.broadcast %6 : vector<1x1x32xf32> to vector<2x1x32xf32>
    "tpu.trace_start"() <{level = 10 : i32, message = "bqh,bsh->bqs"}> : () -> ()
    %cst = arith.constant dense<0.000000e+00> : vector<2x1x8xf32>
    %8 = tpu.matmul %7, %3, %cst {dimension_numbers = #tpu.dot_dimension_numbers<[2], [2], [1], [1], [0, 0, 0, 1, 1, 1], [0], [0]>} : vector<2x1x32xf32>, vector<2x8x32xf32>, vector<2x1x8xf32> -> vector<2x1x8xf32>
    "tpu.trace_stop"() : () -> ()
    %9 = vector.shape_cast %8 : vector<2x1x8xf32> to vector<2x8xf32>
    %c0_5 = arith.constant 0 : index
    %c0_6 = arith.constant 0 : index
    %10 = vector.load %arg3[%c0_5, %c0_6] : memref<2x8xf32, #tpu.memory_space<vmem>>, vector<2x8xf32>
    %cst_7 = arith.constant 0.000000e+00 : f32
    %11 = vector.broadcast %cst_7 : f32 to vector<2x8xf32>
    %12 = arith.cmpf one, %10, %11 : vector<2x8xf32>
    %cst_8 = arith.constant -1.000000e+30 : f32
    %13 = vector.broadcast %cst_8 : f32 to vector<2x8xf32>
    %14 = arith.select %12, %9, %13 : vector<2x8xi1>, vector<2x8xf32>
    %c0_9 = arith.constant 0 : index
    %c0_10 = arith.constant 0 : index
    %15 = vector.load %arg6[%c0_9, %c0_10] : memref<2x1xf32, #tpu.memory_space<vmem>>, vector<2x1xf32>
    %cst_11 = arith.constant dense<0xFF800000> : vector<2xf32>
    %16 = vector.multi_reduction <maximumf>, %14, %cst_11 [1] : vector<2x8xf32> to vector<2xf32>
    %17 = vector.shape_cast %16 : vector<2xf32> to vector<2x1xf32>
    %18 = arith.maximumf %15, %17 : vector<2x1xf32>
    %19 = arith.subf %15, %18 : vector<2x1xf32>
    %20 = math.exp %19 : vector<2x1xf32>
    %21 = vector.broadcast %18 : vector<2x1xf32> to vector<2x8xf32>
    %22 = arith.subf %14, %21 : vector<2x8xf32>
    %23 = math.exp %22 : vector<2x8xf32>
    %c0_12 = arith.constant 0 : index
    %c0_13 = arith.constant 0 : index
    %24 = vector.load %arg7[%c0_12, %c0_13] : memref<2x1xf32, #tpu.memory_space<vmem>>, vector<2x1xf32>
    %25 = arith.mulf %20, %24 : vector<2x1xf32>
    %cst_14 = arith.constant dense<0.000000e+00> : vector<2xf32>
    %26 = vector.multi_reduction <add>, %23, %cst_14 [1] : vector<2x8xf32> to vector<2xf32>
    %27 = vector.shape_cast %26 : vector<2xf32> to vector<2x1xf32>
    %28 = arith.addf %25, %27 : vector<2x1xf32>
    %c0_15 = arith.constant 0 : index
    %c0_16 = arith.constant 0 : index
    %29 = vector.load %arg7[%c0_15, %c0_16] : memref<2x1xf32, #tpu.memory_space<vmem>>, vector<2x1xf32>
    tpu.vector_store %arg7[%c0_15, %c0_16], %28 {strides = array<i32>} : memref<2x1xf32, #tpu.memory_space<vmem>>, vector<2x1xf32>,
    %30 = vector.shape_cast %23 : vector<2x8xf32> to vector<2x1x8xf32>
    "tpu.trace_start"() <{level = 10 : i32, message = "bqs,bsh->bqh"}> : () -> ()
    %cst_17 = arith.constant dense<0.000000e+00> : vector<2x1x32xf32>
    %31 = tpu.matmul %30, %3, %cst_17 {dimension_numbers = #tpu.dot_dimension_numbers<[2], [1], [1], [2], [0, 0, 0, 1, 1, 2], [0], [0]>} : vector<2x1x8xf32>, vector<2x8x32xf32>, vector<2x1x32xf32> -> vector<2x1x32xf32>
    "tpu.trace_stop"() : () -> ()
    %c0_18 = arith.constant 0 : index
    %c0_19 = arith.constant 0 : index
    %32 = vector.load %arg8[%c0_18, %c0_19] : memref<2x32xf32, #tpu.memory_space<vmem>>, vector<2x32xf32>
    %33 = vector.broadcast %20 : vector<2x1xf32> to vector<2x32xf32>
    %34 = arith.mulf %33, %32 : vector<2x32xf32>
    %35 = vector.shape_cast %31 : vector<2x1x32xf32> to vector<2x32xf32>
    %36 = arith.addf %34, %35 : vector<2x32xf32>
    %c0_20 = arith.constant 0 : index
    %c0_21 = arith.constant 0 : index
    %37 = vector.load %arg8[%c0_20, %c0_21] : memref<2x32xf32, #tpu.memory_space<vmem>>, vector<2x32xf32>
    tpu.vector_store %arg8[%c0_20, %c0_21], %36 {strides = array<i32>} : memref<2x32xf32, #tpu.memory_space<vmem>>, vector<2x32xf32>,
    %c0_22 = arith.constant 0 : index
    %c0_23 = arith.constant 0 : index
    %38 = vector.load %arg6[%c0_22, %c0_23] : memref<2x1xf32, #tpu.memory_space<vmem>>, vector<2x1xf32>
    tpu.vector_store %arg6[%c0_22, %c0_23], %18 {strides = array<i32>} : memref<2x1xf32, #tpu.memory_space<vmem>>, vector<2x1xf32>,
    %c0_i32_24 = arith.constant 0 : i32
    %39 = arith.cmpi eq, %arg1, %c0_i32_24 : i32
    %40 = arith.extui %39 : i1 to i32
    %c0_i32_25 = arith.constant 0 : i32
    %41 = arith.cmpi ne, %40, %c0_i32_25 : i32
    scf.if %41 {
      %c0_26 = arith.constant 0 : index
      %c0_27 = arith.constant 0 : index
      %42 = vector.load %arg7[%c0_26, %c0_27] : memref<2x1xf32, #tpu.memory_space<vmem>>, vector<2x1xf32>
      %43 = tpu.reciprocal %42 {approx = true} : vector<2x1xf32> -> vector<2x1xf32>
      %c0_28 = arith.constant 0 : index
      %c0_29 = arith.constant 0 : index
      %44 = vector.load %arg8[%c0_28, %c0_29] : memref<2x32xf32, #tpu.memory_space<vmem>>, vector<2x32xf32>
      %45 = vector.broadcast %43 : vector<2x1xf32> to vector<2x32xf32>
      %46 = arith.mulf %44, %45 : vector<2x32xf32>
      %c0_30 = arith.constant 0 : index
      %c0_31 = arith.constant 0 : index
      %47 = vector.load %arg5[%c0_30, %c0_31] : memref<2x32xf32, #tpu.memory_space<vmem>>, vector<2x32xf32>
      tpu.vector_store %arg5[%c0_30, %c0_31], %46 {strides = array<i32>} : memref<2x32xf32, #tpu.memory_space<vmem>>, vector<2x32xf32>,
    } else {
    }
    return
  }
  func.func @transform_0(%arg0: i32, %arg1: i32) -> (i32, i32, i32) {
    %c0_i32 = arith.constant 0 : i32
    %c0_i32_0 = arith.constant 0 : i32
    return %arg0, %arg1, %c0_i32 : i32, i32, i32
  }
  func.func @transform_1(%arg0: i32, %arg1: i32) -> (i32, i32) {
    %c0_i32 = arith.constant 0 : i32
    return %arg0, %arg1 : i32, i32
  }
  func.func @transform_2(%arg0: i32, %arg1: i32) -> (i32, i32) {
    %c0_i32 = arith.constant 0 : i32
    %c0_i32_0 = arith.constant 0 : i32
    %c0_i32_1 = arith.constant 0 : i32
    return %c0_i32, %c0_i32_0 : i32, i32
  }
  func.func @transform_3(%arg0: i32, %arg1: i32) -> (i32, i32) {
    %c0_i32 = arith.constant 0 : i32
    %c0_i32_0 = arith.constant 0 : i32
    return %arg0, %c0_i32 : i32, i32
  }
}

</mosaic_0001>

<llo_original>
// kernel: tpu_custom_call.1
$region0: #{tpu_custom_call.1}
  #allocation0 [shape = 'u32[]', space=smem, size = 0x4, offset = 0x4, fixed_abs, tag = 'smem constant byte address 0x4 - core index']
  #allocation1 [shape = 'u32[144,128]{1,0:T(1,128)}', space=vmem, size = 0x12000, scoped, tag = 'internal scratch']
  #allocation2 [shape = 'f32[2,1]{1,0:T(2,128)}', space=vmem, size = 0x400, scoped, tag = 'scratch operand']
  #allocation3 [shape = 'f32[2,1]{1,0:T(2,128)}', space=vmem, size = 0x400, scoped, tag = 'scratch operand']
  #allocation4 [shape = 'f32[2,32]{1,0:T(2,128)}', space=vmem, size = 0x400, scoped, tag = 'scratch operand']
  %s0 = inlined_call_operand.hbm [shape: f32[2,8,32], index: 0, kind: input, shape index: {}]
  %s1 = inlined_call_operand.vmem [shape: f32[2,8], index: 1, kind: input, shape index: {}]
  %s2 = inlined_call_operand.vmem [shape: f32[1,32], index: 2, kind: input, shape index: {}]
  %s3 = inlined_call_operand.hbm [shape: f32[2,32], index: 3, kind: output, shape index: {}]
  %s4 = sld [smem:[#allocation0]]
  $region34: #{tpu_custom_call.1} parent=0
    _
  %s6 = ssub.s32 1, %s4
  %s7 = scalar_select 0, %s6, %s4
  $region1: #{tpu_custom_call.1} parent=0
    #allocation5 [shape = 'u8[8192]{0}', space=vmem, size = 0x2000, scoped, tag = 'input window, operand 0, single buffered']
    #allocation6 [shape = 's32[1]{0}', space=sflag, size = 0x4, scoped, tag = 'scoped memory for tpu_custom_call.1']
    #allocation7 [shape = 's32[1]{0}', space=sflag, size = 0x4, scoped, tag = 'scoped memory for tpu_custom_call.1']
    #allocation8 [shape = 'u8[1024]{0}', space=vmem, size = 0x400, scoped, tag = 'output window, operand 0, single buffered']
    %8 = vsyncpa [#allocation6], 0
    %9 = vsyncpa [#allocation7], 0
    // Predicated region
    $region2: #{tpu_custom_call.1} parent=1 // pred_check
      _
    $region3: #{tpu_custom_call.1} parent=1 // pred_check_branch
      %11 = sbr.rel (0) target = $region5
    $region4: #{tpu_custom_call.1} parent=1 // pred_region
      %s13 = ssub.s32 256, 256
      %14 = vsyncadd [#allocation6], %s13
      %s15 = sshll.u32 [#allocation5], 4
      %s16 = int_to_ptr.vmem [resolvable:$true] %s15
      %21 = dma.hbm_to_vmem [thread:$0]  %s0, 256, %s16, [#allocation6], 128, 128, 8
    $region5: #{tpu_custom_call.1} parent=1 // pred_fallthru
      _
    // Predicated region
    $region6: #{tpu_custom_call.1} parent=1 // pred_check
      _
    $region7: #{tpu_custom_call.1} parent=1 // pred_check_branch
      %23 = sbr.rel (0) target = $region9
    $region8: #{tpu_custom_call.1} parent=1 // pred_region
      _
    $region9: #{tpu_custom_call.1} parent=1 // pred_fallthru
      _
    // Predicated region
    $region10: #{tpu_custom_call.1} parent=1 // pred_check
      _
    $region11: #{tpu_custom_call.1} parent=1 // pred_check_branch
      %25 = sbr.rel (0) target = $region13
    $region12: #{tpu_custom_call.1} parent=1 // pred_region
      _
    $region13: #{tpu_custom_call.1} parent=1 // pred_fallthru
      _
    // Predicated region
    $region14: #{tpu_custom_call.1} parent=1 // pred_check
      _
    $region15: #{tpu_custom_call.1} parent=1 // pred_check_branch
      %27 = sbr.rel (0) target = $region17
    $region16: #{tpu_custom_call.1} parent=1 // pred_region
      %28 = dma.done [#allocation6], 256
    $region17: #{tpu_custom_call.1} parent=1 // pred_fallthru
      _
    %p29 = scmp.eq.s32.totalorder 0, 0
    // Predicated region
    $region18: #{tpu_custom_call.1} parent=1 // pred_check
      %p30 = pneg %p29
    $region19: #{tpu_custom_call.1} parent=1 // pred_check_branch
      %32 = sbr.rel (%p30) target = $region21
    $region20: #{tpu_custom_call.1} parent=1 // pred_region
      %vm33 = vcmask 1024
      %34 = vst.msk [vmem:[#allocation2] sm:$0x3] %vm33, -1e+30
      %35 = vst.msk [vmem:[#allocation3] sm:$0x3] %vm33, 0.0
      %vm36 = vcmask 254976
      %37 = vst.msk [vmem:[#allocation4] sm:$0x3] %vm36, 0.0
    $region21: #{tpu_custom_call.1} parent=1 // pred_fallthru
      _
    %v38 = vld [vmem:[#allocation5] sm:$0xff]
    %v39 = vld [vmem:[#allocation5 + $0x8] sm:$0xff]
    %v40 = vld [vmem:[%s2] sm:$0x1]
    %vm41 = vcmask 261120
    %v43 = vsel %vm41, %v40, 0
    %v46 = vsel %vm41, %v38, 0
    %48 = vmatprep.subr.mxu0 0.0
    %49 = vmatpush1.xpose.msra.mxu0 %v46
    %50 = vmatprep.subr.mxu0 0.0
    %51 = vmatpush1.xpose.msra.mxu0 0.0
    %52 = vmatprep.subr.mxu0 0.0
    %53 = vmatpush1.xpose.msra.mxu0 0.0
    %54 = vmatprep.subr.mxu0 0.0
    %55 = vmatpush1.xpose.msra.mxu0 0.0
    %56 = vmatprep.subr.mxu0 0.0
    %57 = vmatpush1.xpose.msra.mxu0 0.0
    %58 = vmatprep.subr.mxu0 0.0
    %59 = vmatpush1.xpose.msra.mxu0 0.0
    %60 = vmatprep.subr.mxu0 0.0
    %61 = vmatpush1.xpose.msra.mxu0 0.0
    %62 = vmatprep.subr.mxu0 0.0
    %63 = vmatpush1.xpose.msra.mxu0 0.0
    %64 = vmatprep.subr.mxu0 0.0
    %65 = vmatpush1.xpose.msra.mxu0 0.0
    %66 = vmatprep.subr.mxu0 0.0
    %67 = vmatpush1.xpose.msra.mxu0 0.0
    %68 = vmatprep.subr.mxu0 0.0
    %69 = vmatpush1.xpose.msra.mxu0 0.0
    %70 = vmatprep.subr.mxu0 0.0
    %71 = vmatpush1.xpose.msra.mxu0 0.0
    %72 = vmatprep.subr.mxu0 0.0
    %73 = vmatpush1.xpose.msra.mxu0 0.0
    %74 = vmatprep.subr.mxu0 0.0
    %75 = vmatpush1.xpose.msra.mxu0 0.0
    %76 = vmatprep.subr.mxu0 0.0
    %77 = vmatpush1.xpose.msra.mxu0 0.0
    %78 = vmatprep.subr.mxu0 0.0
    %79 = vmatpush1.xpose.msra.mxu0 0.0
    %80 = vmatprep.subr.mxu0 0.0
    %81 = vmatpush1.xpose.msra.mxu0 0.0
    %82 = vmatprep.subr.mxu0 0.0
    %83 = vmatpush1.xpose.msra.mxu0 0.0
    %84 = vmatprep.subr.mxu0 0.0
    %85 = vmatpush1.xpose.msra.mxu0 0.0
    %86 = vmatprep.subr.mxu0 0.0
    %87 = vmatpush1.xpose.msra.mxu0 0.0
    %88 = vmatprep.subr.mxu0 0.0
    %89 = vmatpush1.xpose.msra.mxu0 0.0
    %90 = vmatprep.subr.mxu0 0.0
    %91 = vmatpush1.xpose.msra.mxu0 0.0
    %92 = vmatprep.subr.mxu0 0.0
    %93 = vmatpush1.xpose.msra.mxu0 0.0
    %94 = vmatprep.subr.mxu0 0.0
    %95 = vmatpush1.xpose.msra.mxu0 0.0
    %96 = vmatprep.subr.mxu0 0.0
    %97 = vmatpush1.xpose.msra.mxu0 0.0
    %98 = vmatprep.subr.mxu0 0.0
    %99 = vmatpush1.xpose.msra.mxu0 0.0
    %100 = vmatprep.subr.mxu0 0.0
    %101 = vmatpush1.xpose.msra.mxu0 0.0
    %102 = vmatprep.subr.mxu0 0.0
    %103 = vmatpush1.xpose.msra.mxu0 0.0
    %104 = vmatprep.subr.mxu0 0.0
    %105 = vmatpush1.xpose.msra.mxu0 0.0
    %106 = vmatprep.subr.mxu0 0.0
    %107 = vmatpush1.xpose.msra.mxu0 0.0
    %108 = vmatprep.subr.mxu0 0.0
    %109 = vmatpush1.xpose.msra.mxu0 0.0
    %110 = vmatprep.subr.mxu0 0.0
    %111 = vmatpush1.xpose.msra.mxu0 0.0
    %112 = vmatprep.mubr.f32.mxu0 0.0
    %113 = vmatmul.mubr.f32.gmra.mrb[0].mxu0 %v43
    %v114 = vpop.f32.mrb[0].mxu0
    %v115 = vadd.f32 0.0, %v114
    %v116 = vpop.f32.mrb[0].mxu0
    %117 = vdwg.mxu0
    %v119 = vsel %vm41, %v39, 0
    %121 = vmatprep.subr.mxu0 0.0
    %122 = vmatpush1.xpose.msra.mxu0 %v119
    %123 = vmatprep.subr.mxu0 0.0
    %124 = vmatpush1.xpose.msra.mxu0 0.0
    %125 = vmatprep.subr.mxu0 0.0
    %126 = vmatpush1.xpose.msra.mxu0 0.0
    %127 = vmatprep.subr.mxu0 0.0
    %128 = vmatpush1.xpose.msra.mxu0 0.0
    %129 = vmatprep.subr.mxu0 0.0
    %130 = vmatpush1.xpose.msra.mxu0 0.0
    %131 = vmatprep.subr.mxu0 0.0
    %132 = vmatpush1.xpose.msra.mxu0 0.0
    %133 = vmatprep.subr.mxu0 0.0
    %134 = vmatpush1.xpose.msra.mxu0 0.0
    %135 = vmatprep.subr.mxu0 0.0
    %136 = vmatpush1.xpose.msra.mxu0 0.0
    %137 = vmatprep.subr.mxu0 0.0
    %138 = vmatpush1.xpose.msra.mxu0 0.0
    %139 = vmatprep.subr.mxu0 0.0
    %140 = vmatpush1.xpose.msra.mxu0 0.0
    %141 = vmatprep.subr.mxu0 0.0
    %142 = vmatpush1.xpose.msra.mxu0 0.0
    %143 = vmatprep.subr.mxu0 0.0
    %144 = vmatpush1.xpose.msra.mxu0 0.0
    %145 = vmatprep.subr.mxu0 0.0
    %146 = vmatpush1.xpose.msra.mxu0 0.0
    %147 = vmatprep.subr.mxu0 0.0
    %148 = vmatpush1.xpose.msra.mxu0 0.0
    %149 = vmatprep.subr.mxu0 0.0
    %150 = vmatpush1.xpose.msra.mxu0 0.0
    %151 = vmatprep.subr.mxu0 0.0
    %152 = vmatpush1.xpose.msra.mxu0 0.0
    %153 = vmatprep.subr.mxu0 0.0
    %154 = vmatpush1.xpose.msra.mxu0 0.0
    %155 = vmatprep.subr.mxu0 0.0
    %156 = vmatpush1.xpose.msra.mxu0 0.0
    %157 = vmatprep.subr.mxu0 0.0
    %158 = vmatpush1.xpose.msra.mxu0 0.0
    %159 = vmatprep.subr.mxu0 0.0
    %160 = vmatpush1.xpose.msra.mxu0 0.0
    %161 = vmatprep.subr.mxu0 0.0
    %162 = vmatpush1.xpose.msra.mxu0 0.0
    %163 = vmatprep.subr.mxu0 0.0
    %164 = vmatpush1.xpose.msra.mxu0 0.0
    %165 = vmatprep.subr.mxu0 0.0
    %166 = vmatpush1.xpose.msra.mxu0 0.0
    %167 = vmatprep.subr.mxu0 0.0
    %168 = vmatpush1.xpose.msra.mxu0 0.0
    %169 = vmatprep.subr.mxu0 0.0
    %170 = vmatpush1.xpose.msra.mxu0 0.0
    %171 = vmatprep.subr.mxu0 0.0
    %172 = vmatpush1.xpose.msra.mxu0 0.0
    %173 = vmatprep.subr.mxu0 0.0
    %174 = vmatpush1.xpose.msra.mxu0 0.0
    %175 = vmatprep.subr.mxu0 0.0
    %176 = vmatpush1.xpose.msra.mxu0 0.0
    %177 = vmatprep.subr.mxu0 0.0
    %178 = vmatpush1.xpose.msra.mxu0 0.0
    %179 = vmatprep.subr.mxu0 0.0
    %180 = vmatpush1.xpose.msra.mxu0 0.0
    %181 = vmatprep.subr.mxu0 0.0
    %182 = vmatpush1.xpose.msra.mxu0 0.0
    %183 = vmatprep.subr.mxu0 0.0
    %184 = vmatpush1.xpose.msra.mxu0 0.0
    %185 = vmatprep.mubr.f32.mxu0 0.0
    %186 = vmatmul.mubr.f32.gmra.mrb[0].mxu0 %v43
    %v187 = vpop.f32.mrb[0].mxu0
    %v188 = vadd.f32 0.0, %v187
    %v189 = vpop.f32.mrb[0].mxu0
    %190 = vdwg.mxu0
    %v191 = vld [vmem:[%s1] sm:$0x3]
    %vm192 = vcmp.ne.f32.partialorder %v191, 0.0
    %v195 = vrot.slane %v188, 7
    %vm196 = vcmask 1041409
    %v197 = vsel %vm196, %v195, %v115
    %v199 = vsel %vm192, %v197, -1e+30
    %v200 = vld [vmem:[#allocation2] sm:$0x3]
    %vm201 = vcmask 58368
    %v202 = vsel %vm201, %v199, -inf
    %203 = vmax.xlane.f32.xlu0 %v202
    %v204 = vpop.xlane.xlu0 %203
    %v205 = vmax.f32 %v200, %v204
    %v206 = vsub.f32 %v200, %v205
    %v207 = vmul.f32 %v206, 1.442695
    %v208 = vpow.pop %v207
    %210 = vset.pattern.permute.xlu0 0
    %211 = vperm.xlu0 %210, %v205
    %v212 = vpop.permute.xlu0 %211
    %v214 = vsub.f32 %v199, %v212
    %v215 = vmul.f32 %v214, 1.442695
    %v216 = vpow.pop %v215
    %v217 = vld [vmem:[#allocation3] sm:$0x3]
    %v218 = vmul.f32 %v208, %v217
    %v219 = vsel %vm201, %v216, 0.0
    %220 = vadd.xlane.f32.xlu0 %v219
    %v221 = vpop.xlane.xlu0 %220
    %v222 = vadd.f32 %v218, %v221
    %vm223 = vcmask 1024
    %224 = vst.msk [vmem:[#allocation3] sm:$0x3] %vm223, %v222
    %v227 = vunpack.c.l.s4 1966171168
    %v228 = vunpack.c.0.s8 %v227
    %v229 = vlaneseq
    %v230 = vshrl.u32 %v229, 7
    %v231 = vsub.s32 %v228, %v230
    %v232 = vrot.slane %v216, %v231
    %v233 = vcombine.high %v232, %v232
    %v235 = vunpack.c.l.s4 1966171168
    %v236 = vunpack.c.0.s8 %v235
    %v237 = vlaneseq
    %v238 = vshrl.u32 %v237, 7
    %v239 = vsub.s32 %v236, %v238
    %v240 = vrot.slane %v232, %v239
    %v242 = vunpack.c.l.s4 1966171168
    %v243 = vunpack.c.0.s8 %v242
    %v244 = vlaneseq
    %v245 = vshrl.u32 %v244, 7
    %v246 = vsub.s32 %v243, %v245
    %v247 = vrot.slane %v233, %v246
    %vm248 = vcmask 64512
    %v249 = vsel %vm248, %v240, 0
    %251 = vmatprep.subr.mxu0 0.0
    %252 = vmatpush1.msra.mxu0 %v38
    %253 = vmatprep.subr.mxu0 0.0
    %254 = vmatpush1.msra.mxu0 0.0
    %255 = vmatprep.subr.mxu0 0.0
    %256 = vmatpush1.msra.mxu0 0.0
    %257 = vmatprep.subr.mxu0 0.0
    %258 = vmatpush1.msra.mxu0 0.0
    %259 = vmatprep.subr.mxu0 0.0
    %260 = vmatpush1.msra.mxu0 0.0
    %261 = vmatprep.subr.mxu0 0.0
    %262 = vmatpush1.msra.mxu0 0.0
    %263 = vmatprep.subr.mxu0 0.0
    %264 = vmatpush1.msra.mxu0 0.0
    %265 = vmatprep.subr.mxu0 0.0
    %266 = vmatpush1.msra.mxu0 0.0
    %267 = vmatprep.subr.mxu0 0.0
    %268 = vmatpush1.msra.mxu0 0.0
    %269 = vmatprep.subr.mxu0 0.0
    %270 = vmatpush1.msra.mxu0 0.0
    %271 = vmatprep.subr.mxu0 0.0
    %272 = vmatpush1.msra.mxu0 0.0
    %273 = vmatprep.subr.mxu0 0.0
    %274 = vmatpush1.msra.mxu0 0.0
    %275 = vmatprep.subr.mxu0 0.0
    %276 = vmatpush1.msra.mxu0 0.0
    %277 = vmatprep.subr.mxu0 0.0
    %278 = vmatpush1.msra.mxu0 0.0
    %279 = vmatprep.subr.mxu0 0.0
    %280 = vmatpush1.msra.mxu0 0.0
    %281 = vmatprep.subr.mxu0 0.0
    %282 = vmatpush1.msra.mxu0 0.0
    %283 = vmatprep.subr.mxu0 0.0
    %284 = vmatpush1.msra.mxu0 0.0
    %285 = vmatprep.subr.mxu0 0.0
    %286 = vmatpush1.msra.mxu0 0.0
    %287 = vmatprep.subr.mxu0 0.0
    %288 = vmatpush1.msra.mxu0 0.0
    %289 = vmatprep.subr.mxu0 0.0
    %290 = vmatpush1.msra.mxu0 0.0
    %291 = vmatprep.subr.mxu0 0.0
    %292 = vmatpush1.msra.mxu0 0.0
    %293 = vmatprep.subr.mxu0 0.0
    %294 = vmatpush1.msra.mxu0 0.0
    %295 = vmatprep.subr.mxu0 0.0
    %296 = vmatpush1.msra.mxu0 0.0
    %297 = vmatprep.subr.mxu0 0.0
    %298 = vmatpush1.msra.mxu0 0.0
    %299 = vmatprep.subr.mxu0 0.0
    %300 = vmatpush1.msra.mxu0 0.0
    %301 = vmatprep.subr.mxu0 0.0
    %302 = vmatpush1.msra.mxu0 0.0
    %303 = vmatprep.subr.mxu0 0.0
    %304 = vmatpush1.msra.mxu0 0.0
    %305 = vmatprep.subr.mxu0 0.0
    %306 = vmatpush1.msra.mxu0 0.0
    %307 = vmatprep.subr.mxu0 0.0
    %308 = vmatpush1.msra.mxu0 0.0
    %309 = vmatprep.subr.mxu0 0.0
    %310 = vmatpush1.msra.mxu0 0.0
    %311 = vmatprep.subr.mxu0 0.0
    %312 = vmatpush1.msra.mxu0 0.0
    %313 = vmatprep.subr.mxu0 0.0
    %314 = vmatpush1.msra.mxu0 0.0
    %315 = vmatprep.mubr.f32.mxu0 0.0
    %316 = vmatmul.mubr.f32.gmra.mrb[0].mxu0 %v249
    %v317 = vpop.f32.mrb[0].mxu0
    %v318 = vadd.f32 0.0, %v317
    %v319 = vpop.f32.mrb[0].mxu0
    %320 = vdwg.mxu0
    %v321 = vsel %vm248, %v247, 0
    %323 = vmatprep.subr.mxu0 0.0
    %324 = vmatpush1.msra.mxu0 %v39
    %325 = vmatprep.subr.mxu0 0.0
    %326 = vmatpush1.msra.mxu0 0.0
    %327 = vmatprep.subr.mxu0 0.0
    %328 = vmatpush1.msra.mxu0 0.0
    %329 = vmatprep.subr.mxu0 0.0
    %330 = vmatpush1.msra.mxu0 0.0
    %331 = vmatprep.subr.mxu0 0.0
    %332 = vmatpush1.msra.mxu0 0.0
    %333 = vmatprep.subr.mxu0 0.0
    %334 = vmatpush1.msra.mxu0 0.0
    %335 = vmatprep.subr.mxu0 0.0
    %336 = vmatpush1.msra.mxu0 0.0
    %337 = vmatprep.subr.mxu0 0.0
    %338 = vmatpush1.msra.mxu0 0.0
    %339 = vmatprep.subr.mxu0 0.0
    %340 = vmatpush1.msra.mxu0 0.0
    %341 = vmatprep.subr.mxu0 0.0
    %342 = vmatpush1.msra.mxu0 0.0
    %343 = vmatprep.subr.mxu0 0.0
    %344 = vmatpush1.msra.mxu0 0.0
    %345 = vmatprep.subr.mxu0 0.0
    %346 = vmatpush1.msra.mxu0 0.0
    %347 = vmatprep.subr.mxu0 0.0
    %348 = vmatpush1.msra.mxu0 0.0
    %349 = vmatprep.subr.mxu0 0.0
    %350 = vmatpush1.msra.mxu0 0.0
    %351 = vmatprep.subr.mxu0 0.0
    %352 = vmatpush1.msra.mxu0 0.0
    %353 = vmatprep.subr.mxu0 0.0
    %354 = vmatpush1.msra.mxu0 0.0
    %355 = vmatprep.subr.mxu0 0.0
    %356 = vmatpush1.msra.mxu0 0.0
    %357 = vmatprep.subr.mxu0 0.0
    %358 = vmatpush1.msra.mxu0 0.0
    %359 = vmatprep.subr.mxu0 0.0
    %360 = vmatpush1.msra.mxu0 0.0
    %361 = vmatprep.subr.mxu0 0.0
    %362 = vmatpush1.msra.mxu0 0.0
    %363 = vmatprep.subr.mxu0 0.0
    %364 = vmatpush1.msra.mxu0 0.0
    %365 = vmatprep.subr.mxu0 0.0
    %366 = vmatpush1.msra.mxu0 0.0
    %367 = vmatprep.subr.mxu0 0.0
    %368 = vmatpush1.msra.mxu0 0.0
    %369 = vmatprep.subr.mxu0 0.0
    %370 = vmatpush1.msra.mxu0 0.0
    %371 = vmatprep.subr.mxu0 0.0
    %372 = vmatpush1.msra.mxu0 0.0
    %373 = vmatprep.subr.mxu0 0.0
    %374 = vmatpush1.msra.mxu0 0.0
    %375 = vmatprep.subr.mxu0 0.0
    %376 = vmatpush1.msra.mxu0 0.0
    %377 = vmatprep.subr.mxu0 0.0
    %378 = vmatpush1.msra.mxu0 0.0
    %379 = vmatprep.subr.mxu0 0.0
    %380 = vmatpush1.msra.mxu0 0.0
    %381 = vmatprep.subr.mxu0 0.0
    %382 = vmatpush1.msra.mxu0 0.0
    %383 = vmatprep.subr.mxu0 0.0
    %384 = vmatpush1.msra.mxu0 0.0
    %385 = vmatprep.subr.mxu0 0.0
    %386 = vmatpush1.msra.mxu0 0.0
    %387 = vmatprep.mubr.f32.mxu0 0.0
    %388 = vmatmul.mubr.f32.gmra.mrb[0].mxu0 %v321
    %v389 = vpop.f32.mrb[0].mxu0
    %v390 = vadd.f32 0.0, %v389
    %v391 = vpop.f32.mrb[0].mxu0
    %392 = vdwg.mxu0
    %v393 = vld [vmem:[#allocation4] sm:$0x3]
    %395 = vset.pattern.permute.xlu0 0
    %396 = vperm.xlu0 %395, %v208
    %v397 = vpop.permute.xlu0 %396
    %v399 = vmul.f32 %v397, %v393
    %v402 = vrot.slane %v390, 7
    %v403 = vsel %vm196, %v402, %v318
    %v405 = vadd.f32 %v399, %v403
    %vm406 = vcmask 254976
    %407 = vst.msk [vmem:[#allocation4] sm:$0x3] %vm406, %v405
    %408 = vst.msk [vmem:[#allocation2] sm:$0x3] %vm223, %v205
    // Predicated region
    $region22: #{tpu_custom_call.1} parent=1 // pred_check
      %p409 = pneg %p29
    $region23: #{tpu_custom_call.1} parent=1 // pred_check_branch
      %411 = sbr.rel (%p409) target = $region25
    $region24: #{tpu_custom_call.1} parent=1 // pred_region
      %v412 = vld [vmem:[#allocation3] sm:$0x3]
      %v413 = vrcp.pop %v412
      %v414 = vld [vmem:[#allocation4] sm:$0x3]
      %416 = vset.pattern.permute.xlu0 0
      %417 = vperm.xlu0 %416, %v413
      %v418 = vpop.permute.xlu0 %417
      %v420 = vmul.f32 %v414, %v418
      %421 = vst.msk [vmem:[#allocation8] sm:$0x3] %vm406, %v420
    $region25: #{tpu_custom_call.1} parent=1 // pred_fallthru
      _
    // Predicated region
    $region26: #{tpu_custom_call.1} parent=1 // pred_check
      _
    $region27: #{tpu_custom_call.1} parent=1 // pred_check_branch
      %423 = sbr.rel (0) target = $region29
    $region28: #{tpu_custom_call.1} parent=1 // pred_region
      %s425 = ssub.s32 32, 32
      %426 = vsyncadd [#allocation7], %s425
      %s428 = sshll.u32 [#allocation8], 4
      %s429 = int_to_ptr.vmem [resolvable:$true] %s428
      %431 = dma.vmem_to_hbm [thread:$0]  %s429, 32, %s3, [#allocation7]
    $region29: #{tpu_custom_call.1} parent=1 // pred_fallthru
      _
    // Predicated region
    $region30: #{tpu_custom_call.1} parent=1 // pred_check
      _
    $region31: #{tpu_custom_call.1} parent=1 // pred_check_branch
      %433 = sbr.rel (0) target = $region33
    $region32: #{tpu_custom_call.1} parent=1 // pred_region
      %434 = dma.done [#allocation7], 32
    $region33: #{tpu_custom_call.1} parent=1 // pred_fallthru
      _
    %435 = vsyncpa [#allocation6], 1
    %436 = vsyncpa [#allocation7], 1

</llo_original>
